<compile_context>
chip_gen: v6e
topology: v6e:2x2x1
jax: 0.10.0
libtpu: 0.0.40
codegen_flags: <defaults>
</compile_context>

<pallas_src>
import jax
import jax.numpy as jnp
from jax.experimental import pallas as pl
from jax.experimental.pallas import tpu as pltpu


def _min_readout_kernel(seq_ref, out_ref):
    # seq_ref: (tb, tn, Df) input tile
    # out_ref: (tb, Df) running-min accumulator (same block across the k axis)
    tile_min = jnp.min(seq_ref[...], axis=1)
    k = pl.program_id(1)

    @pl.when(k == 0)
    def _():
        out_ref[...] = tile_min                      # init from first tile (int-safe)

    @pl.when(k != 0)
    def _():
        out_ref[...] = jnp.minimum(out_ref[...], tile_min)


def min_readout(seq: jax.Array, *, tn: int | None = None,
                tile_bytes: int = 4 * 1024 * 1024) -> jax.Array:
    """Pallas TPU implementation of MinReadout: min over axis 1 of (B, N, D)."""
    B, N, D = seq.shape
    dtype = seq.dtype
    itemsize = jnp.dtype(dtype).itemsize

    # ---- lane-dense folding: pack f consecutive nodes into the lane dim when D < 128
    f = 1
    if D < 128 and 128 % D == 0:
        cand = 128 // D
        if N % cand == 0:
            f = cand
    Df = f * D
    Nf = N // f
    if f > 1:
        seq = seq.reshape(B, Nf, Df)                 # contiguous reshape, no transpose

    # ---- batch tile for the leading "parallel" grid axis
    tb = 8 if (B > 8 and B % 8 == 0) else B

    # ---- reduction-tile size from the VMEM budget (~tile_bytes per input buffer)
    if tn is None:
        tn = max(1, tile_bytes // (tb * Df * itemsize))
    if Nf <= 8 or tn >= Nf:
        tn = Nf                                      # single step, full-extent block
    else:
        tn = max(8, (min(tn, Nf) // 8) * 8)          # keep (8,128) sublane alignment

    # ---- pad the reduction axis so ragged N is handled correctly
    n_steps = -(-Nf // tn)
    Np = n_steps * tn
    if Np != Nf:
        if jnp.issubdtype(dtype, jnp.floating):
            pad_val = jnp.array(jnp.inf, dtype)
        else:
            pad_val = jnp.array(jnp.iinfo(dtype).max, dtype)
        seq = jnp.concatenate(
            [seq, jnp.full((B, Np - Nf, Df), pad_val, dtype)], axis=1)

    grid = (B // tb, n_steps)

    out = pl.pallas_call(
        _min_readout_kernel,
        out_shape=jax.ShapeDtypeStruct((B, Df), dtype),
        grid_spec=pl.GridSpec(
            grid=grid,
            in_specs=[pl.BlockSpec((tb, tn, Df), lambda b, k: (b, k, 0))],
            out_specs=pl.BlockSpec((tb, Df), lambda b, k: (b, 0)),
        ),
        compiler_params=pltpu.CompilerParams(
            # B axis parallel (megacore on v7x), reduction axis arbitrary (resident acc)
            dimension_semantics=("parallel", "arbitrary"),
            # ~4 MiB/buffer double-buffered fits comfortably; raise v5e's 16 MiB default,
            # stay well under v7x's 64 MiB physical VMEM.
            vmem_limit_bytes=32 * 1024 * 1024,
        ),
        cost_estimate=pl.CostEstimate(
            flops=0,
            transcendentals=0,
            bytes_accessed=B * Np * Df * itemsize + B * Df * itemsize,
        ),
    )(seq)

    if f > 1:
        # undo the lane folding: min over the f folded node segments
        out = jnp.min(out.reshape(B, f, D), axis=1)
    return out


if __name__ == "__main__":
    key = jax.random.PRNGKey(0)

    # --- main check: small shapes consistent with the module (batch=2, nodes=16, hidden=32)
    B, N, D = 2, 16, 32
    seq = jax.random.normal(key, (B, N, D), dtype=jnp.float32)
    out = jax.block_until_ready(min_readout(seq))
    ref = jnp.min(seq, axis=1)
    assert out.shape == (B, D)
    assert jnp.allclose(out, ref), "float32 mismatch vs reference min-reduction"

    # --- second check: multi-step reduction + ragged-N padding + integer dtype
    B2, N2, D2 = 2, 80, 32
    seq_i = jax.random.randint(jax.random.PRNGKey(1), (B2, N2, D2),
                               minval=-1000, maxval=1000, dtype=jnp.int32)
    out_i = jax.block_until_ready(min_readout(seq_i, tn=8))
    ref_i = jnp.min(seq_i, axis=1)
    assert out_i.shape == (B2, D2)
    assert jnp.array_equal(out_i, ref_i), "int32 mismatch vs reference min-reduction"

    print("KERNEL_OK")
</pallas_src>

<mosaic_0001>
module attributes {stable_mosaic.version = 11 : i64} {
  func.func @_min_readout_kernel(%arg0: i32, %arg1: i32, %arg2: memref<2x4x128xf32, #tpu.memory_space<vmem>>, %arg3: memref<2x128xf32, #tpu.memory_space<vmem>>) attributes {dimension_semantics = [#tpu.dimension_semantics<parallel>, #tpu.dimension_semantics<arbitrary>], iteration_bounds = array<i64: 1, 1>, scalar_prefetch = 0 : i64, scratch_operands = 0 : i64, tpu.core_type = #tpu.core_type<tc>, window_params = [{transform_indices = @transform_0, window_bounds = array<i64: 2, 4, 128>}, {transform_indices = @transform_1, window_bounds = array<i64: 2, 128>}]} {
    %c0 = arith.constant 0 : index
    %c0_0 = arith.constant 0 : index
    %c0_1 = arith.constant 0 : index
    %0 = vector.load %arg2[%c0, %c0_0, %c0_1] : memref<2x4x128xf32, #tpu.memory_space<vmem>>, vector<2x4x128xf32>
    %cst = arith.constant dense<0x7F800000> : vector<2x128xf32>
    %1 = vector.multi_reduction <minimumf>, %0, %cst [1] : vector<2x4x128xf32> to vector<2x128xf32>
    %c0_i32 = arith.constant 0 : i32
    %2 = arith.cmpi eq, %arg1, %c0_i32 : i32
    %3 = arith.extui %2 : i1 to i32
    %c0_i32_2 = arith.constant 0 : i32
    %4 = arith.cmpi ne, %3, %c0_i32_2 : i32
    scf.if %4 {
      %c0_5 = arith.constant 0 : index
      %c0_6 = arith.constant 0 : index
      %8 = vector.load %arg3[%c0_5, %c0_6] : memref<2x128xf32, #tpu.memory_space<vmem>>, vector<2x128xf32>
      tpu.vector_store %arg3[%c0_5, %c0_6], %1 {strides = array<i32>} : memref<2x128xf32, #tpu.memory_space<vmem>>, vector<2x128xf32>,
    } else {
    }
    %c0_i32_3 = arith.constant 0 : i32
    %5 = arith.cmpi ne, %arg1, %c0_i32_3 : i32
    %6 = arith.extui %5 : i1 to i32
    %c0_i32_4 = arith.constant 0 : i32
    %7 = arith.cmpi ne, %6, %c0_i32_4 : i32
    scf.if %7 {
      %c0_5 = arith.constant 0 : index
      %c0_6 = arith.constant 0 : index
      %8 = vector.load %arg3[%c0_5, %c0_6] : memref<2x128xf32, #tpu.memory_space<vmem>>, vector<2x128xf32>
      %9 = arith.minimumf %8, %1 : vector<2x128xf32>
      %c0_7 = arith.constant 0 : index
      %c0_8 = arith.constant 0 : index
      %10 = vector.load %arg3[%c0_7, %c0_8] : memref<2x128xf32, #tpu.memory_space<vmem>>, vector<2x128xf32>
      tpu.vector_store %arg3[%c0_7, %c0_8], %9 {strides = array<i32>} : memref<2x128xf32, #tpu.memory_space<vmem>>, vector<2x128xf32>,
    } else {
    }
    return
  }
  func.func @transform_0(%arg0: i32, %arg1: i32) -> (i32, i32, i32) {
    %c0_i32 = arith.constant 0 : i32
    %c0_i32_0 = arith.constant 0 : i32
    return %arg0, %arg1, %c0_i32 : i32, i32, i32
  }
  func.func @transform_1(%arg0: i32, %arg1: i32) -> (i32, i32) {
    %c0_i32 = arith.constant 0 : i32
    %c0_i32_0 = arith.constant 0 : i32
    return %arg0, %c0_i32 : i32, i32
  }
}

</mosaic_0001>

<llo_original>
// kernel: tpu_custom_call.1
$region0: #{tpu_custom_call.1}
  #allocation0 [shape = 'u32[]', space=smem, size = 0x4, offset = 0x4, fixed_abs, tag = 'smem constant byte address 0x4 - core index']
  #allocation1 [shape = 'u32[144,128]{1,0:T(1,128)}', space=vmem, size = 0x12000, scoped, tag = 'internal scratch']
  %s0 = inlined_call_operand.hbm [shape: f32[2,4,128], index: 0, kind: input, shape index: {}]
  %s1 = inlined_call_operand.hbm [shape: f32[2,128], index: 1, kind: output, shape index: {}]
  %s2 = sld [smem:[#allocation0]]
  $region26: #{tpu_custom_call.1} parent=0
    _
  %s4 = ssub.s32 1, %s2
  %s5 = scalar_select 0, %s4, %s2
  $region1: #{tpu_custom_call.1} parent=0
    #allocation2 [shape = 'u8[4096]{0}', space=vmem, size = 0x1000, scoped, tag = 'input window, operand 0, single buffered']
    #allocation3 [shape = 's32[1]{0}', space=sflag, size = 0x4, scoped, tag = 'scoped memory for tpu_custom_call.1']
    #allocation4 [shape = 's32[1]{0}', space=sflag, size = 0x4, scoped, tag = 'scoped memory for tpu_custom_call.1']
    #allocation5 [shape = 'u8[1024]{0}', space=vmem, size = 0x400, scoped, tag = 'output window, operand 0, single buffered']
    %6 = vsyncpa [#allocation3], 0
    %7 = vsyncpa [#allocation4], 0
    // Predicated region
    $region2: #{tpu_custom_call.1} parent=1 // pred_check
      _
    $region3: #{tpu_custom_call.1} parent=1 // pred_check_branch
      %9 = sbr.rel (0) target = $region5
    $region4: #{tpu_custom_call.1} parent=1 // pred_region
      %s11 = ssub.s32 128, 128
      %12 = vsyncadd [#allocation3], %s11
      %s13 = sshll.u32 [#allocation2], 4
      %s14 = int_to_ptr.vmem [resolvable:$true] %s13
      %19 = dma.hbm_to_vmem [thread:$0]  %s0, 128, %s14, [#allocation3], 64, 64, 4
    $region5: #{tpu_custom_call.1} parent=1 // pred_fallthru
      _
    // Predicated region
    $region6: #{tpu_custom_call.1} parent=1 // pred_check
      _
    $region7: #{tpu_custom_call.1} parent=1 // pred_check_branch
      %21 = sbr.rel (0) target = $region9
    $region8: #{tpu_custom_call.1} parent=1 // pred_region
      %22 = dma.done [#allocation3], 128
    $region9: #{tpu_custom_call.1} parent=1 // pred_fallthru
      _
    %v23 = vld [vmem:[#allocation2] sm:$0xf]
    %v24 = vld [vmem:[#allocation2 + $0x4] sm:$0xf]
    %vm25 = vcmask 1043456
    %v26 = vsel %vm25, %v23, inf
    %v27 = vrot.slane %v26, 4
    %v28 = vmin.f32 %v26, %v27
    %v29 = vrot.slane %v28, 2
    %v30 = vmin.f32 %v28, %v29
    %v31 = vrot.slane %v30, 1
    %v32 = vmin.f32 %v30, %v31
    %v33 = vsel %vm25, %v24, inf
    %v34 = vrot.slane %v33, 4
    %v35 = vmin.f32 %v33, %v34
    %v36 = vrot.slane %v35, 2
    %v37 = vmin.f32 %v35, %v36
    %v38 = vrot.slane %v37, 1
    %v39 = vmin.f32 %v37, %v38
    %p40 = scmp.eq.s32.totalorder 0, 0
    // Predicated region
    $region10: #{tpu_custom_call.1} parent=1 // pred_check
      %p41 = pneg %p40
    $region11: #{tpu_custom_call.1} parent=1 // pred_check_branch
      %43 = sbr.rel (%p41) target = $region13
    $region12: #{tpu_custom_call.1} parent=1 // pred_region
      %vm46 = vcmask 1041409
      %v47 = vsel %vm46, %v39, %v32
      %49 = vst [vmem:[#allocation5] sm:$0x3] %v47
    $region13: #{tpu_custom_call.1} parent=1 // pred_fallthru
      _
    %p50 = scmp.ne.s32.totalorder 0, 0
    // Predicated region
    $region14: #{tpu_custom_call.1} parent=1 // pred_check
      %p51 = pneg %p50
    $region15: #{tpu_custom_call.1} parent=1 // pred_check_branch
      %53 = sbr.rel (%p51) target = $region17
    $region16: #{tpu_custom_call.1} parent=1 // pred_region
      %v54 = vld [vmem:[#allocation5] sm:$0x3]
      %vm57 = vcmask 1041409
      %v58 = vsel %vm57, %v39, %v32
      %v60 = vmin.f32 %v54, %v58
      %61 = vst [vmem:[#allocation5] sm:$0x3] %v60
    $region17: #{tpu_custom_call.1} parent=1 // pred_fallthru
      _
    // Predicated region
    $region18: #{tpu_custom_call.1} parent=1 // pred_check
      _
    $region19: #{tpu_custom_call.1} parent=1 // pred_check_branch
      %63 = sbr.rel (0) target = $region21
    $region20: #{tpu_custom_call.1} parent=1 // pred_region
      %s65 = ssub.s32 32, 32
      %66 = vsyncadd [#allocation4], %s65
      %s68 = sshll.u32 [#allocation5], 4
      %s69 = int_to_ptr.vmem [resolvable:$true] %s68
      %71 = dma.vmem_to_hbm [thread:$0]  %s69, 32, %s1, [#allocation4]
    $region21: #{tpu_custom_call.1} parent=1 // pred_fallthru
      _
    // Predicated region
    $region22: #{tpu_custom_call.1} parent=1 // pred_check
      _
    $region23: #{tpu_custom_call.1} parent=1 // pred_check_branch
      %73 = sbr.rel (0) target = $region25
    $region24: #{tpu_custom_call.1} parent=1 // pred_region
      %74 = dma.done [#allocation4], 32
    $region25: #{tpu_custom_call.1} parent=1 // pred_fallthru
      _
    %75 = vsyncpa [#allocation3], 1
    %76 = vsyncpa [#allocation4], 1

</llo_original>
